<compile_context>
chip_gen: v6e
topology: v6e:2x2x1
jax: 0.10.0
libtpu: 0.0.40
codegen_flags: <defaults>
</compile_context>

<pallas_src>
import math
from functools import partial

import jax
import jax.numpy as jnp
from jax.experimental import pallas as pl
from jax.experimental.pallas import tpu as pltpu

BN_EPS = 1e-5
VMEM_LIMIT = 48 * 1024 * 1024


def _round_up(x, m):
    return ((x + m - 1) // m) * m


def _pick_tile(dim, cands=(512, 256, 128)):
    for c in cands:
        if dim % c == 0:
            return c
    return None


# ---------------------------------------------------------------------------
# Fused, tiled matmul + BN-shift (+ residual) (+ ReLU)
# ---------------------------------------------------------------------------
def _mm_kernel(*refs, act, has_res):
    if has_res:
        x_ref, w_ref, s_ref, r_ref, o_ref, acc_ref = refs
    else:
        x_ref, w_ref, s_ref, o_ref, acc_ref = refs
        r_ref = None

    @pl.when(pl.program_id(2) == 0)
    def _():
        acc_ref[...] = jnp.zeros_like(acc_ref)

    acc_ref[...] += jnp.dot(x_ref[...], w_ref[...],
                            preferred_element_type=jnp.float32)

    @pl.when(pl.program_id(2) == pl.num_programs(2) - 1)
    def _():
        y = acc_ref[...] + s_ref[...]
        if r_ref is not None:
            y = y + r_ref[...].astype(jnp.float32)
        if act:
            y = jnp.maximum(y, 0.0)
        o_ref[...] = y.astype(o_ref.dtype)


def matmul_bn_act(x, w, shift, *, act, residual=None, out_dtype=jnp.bfloat16):
    """x: (M, K) bf16 ; w: (K, Np) bf16 pre-padded (Np % 128 == 0, BN scale folded);
    shift: (1, Np) f32.  Optional residual (M, Np) added before ReLU."""
    M, K = x.shape
    Kw, Np = w.shape
    assert Kw == K and Np % 128 == 0

    # K tile: full K when not lane aligned (single reduction step) so the
    # activation is never padded along K; otherwise the largest aligned tile.
    tk = _pick_tile(K, (512, 384, 256, 128)) or K
    # M tile: full M when it fits (no M pad / output slice).
    if M <= 512:
        tm, Mp = M, M
    else:
        tm = _pick_tile(M, (512, 256, 128)) or 512
        Mp = _round_up(M, tm)
    tn = _pick_tile(Np) or 128
    # v7x megacore: expose >= 2 parallel output tiles when possible.
    while (Mp // tm) * (Np // tn) < 2 and tn > 128 and Np % (tn // 2) == 0:
        tn //= 2

    xp = x if Mp == M else jnp.pad(x, ((0, Mp - M), (0, 0)))
    in_specs = [
        pl.BlockSpec((tm, tk), lambda i, j, k: (i, k)),
        pl.BlockSpec((tk, tn), lambda i, j, k: (k, j)),
        pl.BlockSpec((1, tn), lambda i, j, k: (0, j)),
    ]
    args = [xp, w, shift]
    has_res = residual is not None
    if has_res:
        rp = residual if Mp == M else jnp.pad(residual, ((0, Mp - M), (0, 0)))
        in_specs.append(pl.BlockSpec((tm, tn), lambda i, j, k: (i, j)))
        args.append(rp)

    out = pl.pallas_call(
        partial(_mm_kernel, act=act, has_res=has_res),
        out_shape=jax.ShapeDtypeStruct((Mp, Np), out_dtype),
        grid_spec=pltpu.PrefetchScalarGridSpec(
            num_scalar_prefetch=0,
            grid=(Mp // tm, Np // tn, K // tk),
            in_specs=in_specs,
            out_specs=pl.BlockSpec((tm, tn), lambda i, j, k: (i, j)),
            scratch_shapes=[pltpu.VMEM((tm, tn), jnp.float32)],
        ),
        compiler_params=pltpu.CompilerParams(
            dimension_semantics=("parallel", "parallel", "arbitrary"),
            vmem_limit_bytes=VMEM_LIMIT),
    )(*args)
    return out if Mp == M else out[:M]


# ---------------------------------------------------------------------------
# Stride-1 3-tap (grouped) conv kernel: reads the padded activation directly,
# accumulates the taps from shifted VMEM windows (no im2col materialisation).
# ---------------------------------------------------------------------------
def _win_kernel(x_ref, w_ref, s_ref, o_ref, acc_ref, *, taps, lout, act):
    @pl.when(pl.program_id(3) == 0)
    def _():
        acc_ref[...] = jnp.zeros_like(acc_ref)

    acc = acc_ref[...]
    for t in range(taps):
        acc = acc + jnp.dot(x_ref[pl.ds(t, lout), :], w_ref[t],
                            preferred_element_type=jnp.float32)
    acc_ref[...] = acc

    @pl.when(pl.program_id(3) == pl.num_programs(3) - 1)
    def _():
        y = acc_ref[...] + s_ref[...]
        if act:
            y = jnp.maximum(y, 0.0)
        o_ref[...] = y.astype(o_ref.dtype)


def grouped_conv3_s1(x, wg, shiftg, *, act=True):
    """x: (B, L, Cp) bf16; wg: (gp, 3, pcin, pcout) bf16 (pcin/pcout % 128 == 0);
    shiftg: (1, gp*pcout) f32.  Stride-1, padding-1 grouped conv + BN + ReLU."""
    B, L, Cp = x.shape
    gp, taps, pcin, pcout = wg.shape
    lout, ntot = L, gp * pcout
    xp = jnp.pad(x, ((0, 0), (1, 1), (0, 0)))
    lpad = L + 2
    tkc = _pick_tile(pcin) or pcin
    tn = _pick_tile(pcout) or pcout
    kin, nn = pcin // tkc, pcout // tn
    return pl.pallas_call(
        partial(_win_kernel, taps=taps, lout=lout, act=act),
        out_shape=jax.ShapeDtypeStruct((B, lout, ntot), jnp.bfloat16),
        grid_spec=pltpu.PrefetchScalarGridSpec(
            num_scalar_prefetch=0,
            grid=(B, gp, nn, kin),
            in_specs=[
                pl.BlockSpec((None, lpad, tkc),
                             lambda b, g, n, k: (b, 0, g * kin + k)),
                pl.BlockSpec((None, taps, tkc, tn),
                             lambda b, g, n, k: (g, 0, k, n)),
                pl.BlockSpec((1, tn), lambda b, g, n, k: (0, g * nn + n)),
            ],
            out_specs=pl.BlockSpec((None, lout, tn),
                                   lambda b, g, n, k: (b, 0, g * nn + n)),
            scratch_shapes=[pltpu.VMEM((lout, tn), jnp.float32)],
        ),
        compiler_params=pltpu.CompilerParams(
            dimension_semantics=("parallel", "parallel", "parallel", "arbitrary"),
            vmem_limit_bytes=VMEM_LIMIT),
    )(xp, wg, shiftg)


# ---------------------------------------------------------------------------
# Conv wrappers
# ---------------------------------------------------------------------------
def conv1x1_bn_act(x, w, shift, *, stride=1, act, residual=None):
    B, L, C = x.shape
    lout = (L - 1) // stride + 1
    if stride != 1:
        x = jax.lax.slice(x, (0, 0, 0), (B, (lout - 1) * stride + 1, C),
                          (1, stride, 1))
    res2 = None if residual is None else residual.reshape(B * lout, -1)
    out = matmul_bn_act(x.reshape(B * lout, C), w, shift, act=act, residual=res2)
    return out.reshape(B, lout, w.shape[1])


def conv_im2col_bn_act(x, w, shift, *, ksize, stride, padding, act):
    """Generic strided conv via im2col (used only for the 7-tap stem and the rare
    stride-2 grouped conv)."""
    B, L, C = x.shape
    lout = (L + 2 * padding - ksize) // stride + 1
    xp = jnp.pad(x, ((0, 0), (padding, padding), (0, 0)))
    taps = [jax.lax.slice(xp, (0, t, 0), (B, t + (lout - 1) * stride + 1, C),
                          (1, stride, 1)) for t in range(ksize)]
    patches = jnp.concatenate(taps, axis=-1).reshape(B * lout, ksize * C)
    out = matmul_bn_act(patches, w, shift, act=act)
    return out.reshape(B, lout, w.shape[1])


def grouped_conv_bn_relu(x, p, *, stride):
    wg, shiftg = p["wg"], p["shiftg"]
    gp, taps, pcin, pcout = wg.shape          # static Python ints (from shapes)
    if stride == 1:
        return grouped_conv3_s1(x, wg, shiftg)
    # Stride-2 grouped conv (first block of stages 2-4 only): per-pack im2col.
    # TODO(synk): fold the stride-2 taps into the window kernel as well.
    outs = []
    for g in range(gp):
        xg = x if gp == 1 else x[..., g * pcin:(g + 1) * pcin]
        w2 = wg[g].reshape(taps * pcin, pcout)
        sg = shiftg[:, g * pcout:(g + 1) * pcout]
        outs.append(conv_im2col_bn_act(xg, w2, sg, ksize=taps, stride=stride,
                                       padding=1, act=True))
    return outs[0] if gp == 1 else jnp.concatenate(outs, axis=-1)


# ---------------------------------------------------------------------------
# Pooling kernels
# ---------------------------------------------------------------------------
def _maxpool_kernel(x_ref, o_ref, *, lout, c):
    y = x_ref[0]                 # (lout+1, 2C): even rows in [0:C], odd in [C:2C]
    a = y[0:lout, 0:c]
    b = y[0:lout, c:2 * c]
    d = y[1:lout + 1, 0:c]
    o_ref[0] = jnp.maximum(jnp.maximum(a, b), d)


def maxpool1d_k3_s2_p1(x):
    """PyTorch MaxPool1d(kernel_size=3, stride=2, padding=1) on NLC input."""
    B, L, C = x.shape
    lout = (L + 2 - 3) // 2 + 1
    pad_r = 2 * lout + 1 - L
    xp = jnp.pad(x, ((0, 0), (1, pad_r), (0, 0)),
                 constant_values=jnp.array(-jnp.inf, x.dtype))
    lh = lout + 1
    y = xp.reshape(B, lh, 2 * C)                 # free even/odd interleave reshape
    # TODO(synk): tile the channel axis for very wide layers / large batch.
    return pl.pallas_call(
        partial(_maxpool_kernel, lout=lout, c=C),
        out_shape=jax.ShapeDtypeStruct((B, lout, C), x.dtype),
        grid_spec=pltpu.PrefetchScalarGridSpec(
            num_scalar_prefetch=0,
            grid=(B,),
            in_specs=[pl.BlockSpec((1, lh, 2 * C), lambda b: (b, 0, 0))],
            out_specs=pl.BlockSpec((1, lout, C), lambda b: (b, 0, 0))),
        compiler_params=pltpu.CompilerParams(
            dimension_semantics=("parallel",), vmem_limit_bytes=VMEM_LIMIT),
    )(y)


def _avgpool_kernel(x_ref, o_ref, acc_ref, *, inv_l):
    @pl.when(pl.program_id(1) == 0)
    def _():
        acc_ref[...] = jnp.zeros_like(acc_ref)

    acc_ref[...] += jnp.sum(x_ref[...].astype(jnp.float32), axis=1)

    @pl.when(pl.program_id(1) == pl.num_programs(1) - 1)
    def _():
        o_ref[...] = acc_ref[...] * inv_l


def global_avgpool(x):
    """(B, L, Cp) bf16 -> (B, Cp) f32 mean over L, tiled over (C, L)."""
    B, L, C = x.shape
    tl = L if L <= 512 else (_pick_tile(L) or 512)
    lp = _round_up(L, tl)
    if lp != L:
        x = jnp.pad(x, ((0, 0), (0, lp - L), (0, 0)))
    tc = _pick_tile(C) or C
    return pl.pallas_call(
        partial(_avgpool_kernel, inv_l=1.0 / L),
        out_shape=jax.ShapeDtypeStruct((B, C), jnp.float32),
        grid_spec=pltpu.PrefetchScalarGridSpec(
            num_scalar_prefetch=0,
            grid=(C // tc, lp // tl),
            in_specs=[pl.BlockSpec((B, tl, tc), lambda c, l: (0, l, c))],
            out_specs=pl.BlockSpec((B, tc), lambda c, l: (0, c)),
            scratch_shapes=[pltpu.VMEM((B, tc), jnp.float32)]),
        compiler_params=pltpu.CompilerParams(
            dimension_semantics=("parallel", "arbitrary"),
            vmem_limit_bytes=VMEM_LIMIT),
    )(x)


# ---------------------------------------------------------------------------
# Parameter construction (BN scale folded into W; weights pre-padded to the
# channel-padded activation layout so no per-call weight/activation padding)
# ---------------------------------------------------------------------------
def _kaiming_conv(key, cout, cin_g, k):
    std = math.sqrt(2.0 / (cout * k))                  # fan_out, relu
    return std * jax.random.normal(key, (cout, cin_g, k), jnp.float32)


def _bn_params(c):
    gamma = jnp.ones((c,), jnp.float32)
    beta = jnp.zeros((c,), jnp.float32)
    mean = jnp.zeros((c,), jnp.float32)
    var = jnp.ones((c,), jnp.float32)
    scale = gamma / jnp.sqrt(var + BN_EPS)
    shift = beta - mean * scale
    return scale, shift


def _conv_bn_dense(key, cin, cout, ksize, *, cin_stored):
    """Dense conv as a pre-padded matmul weight (ksize*cin_stored, rup(cout,128))
    with zero rows/cols in the padded regions."""
    w_pt = _kaiming_conv(key, cout, cin, ksize)                  # (cout, cin, k)
    scale, shift = _bn_params(cout)
    w = jnp.transpose(w_pt, (2, 1, 0)) * scale[None, None, :]    # (k, cin, cout)
    np_ = _round_up(cout, 128)
    wf = jnp.zeros((ksize, cin_stored, np_), jnp.float32).at[:, :cin, :cout].set(w)
    sf = jnp.zeros((1, np_), jnp.float32).at[0, :cout].set(shift)
    return {"w": wf.reshape(ksize * cin_stored, np_).astype(jnp.bfloat16),
            "shift": sf}


def _build_grouped_pack(w_pt, scale, shift, cin, cout, groups):
    """Pack `groups` into lane-aligned block-diagonal packs: (gp, k, pcin, pcout)."""
    ksize = w_pt.shape[2]
    cin_g, cout_g = cin // groups, cout // groups
    P = groups
    for d in range(1, groups):
        if groups % d == 0 and (d * cin_g) % 128 == 0 and (d * cout_g) % 128 == 0:
            P = d
            break
    gp = groups // P
    pcin, pcout = P * cin_g, P * cout_g
    if gp == 1:                                   # single pack: pad to lane width
        pcin, pcout = _round_up(cin, 128), _round_up(cout, 128)
    w_t = jnp.transpose(w_pt, (2, 1, 0)) * scale[None, None, :]  # (k, cin_g, cout)
    packs = jnp.zeros((gp, ksize, pcin, pcout), jnp.float32)
    sf = jnp.zeros((1, gp * pcout), jnp.float32)
    for pi in range(gp):
        for q in range(P):
            g = pi * P + q
            blk = w_t[:, :, g * cout_g:(g + 1) * cout_g]
            packs = packs.at[pi, :, q * cin_g:(q + 1) * cin_g,
                             q * cout_g:(q + 1) * cout_g].set(blk)
        sf = sf.at[0, pi * pcout: pi * pcout + P * cout_g].set(
            shift[pi * P * cout_g:(pi + 1) * P * cout_g])
    return {"wg": packs.astype(jnp.bfloat16), "shiftg": sf}


def _conv_bn_grouped(key, cin, cout, groups, ksize=3):
    w_pt = _kaiming_conv(key, cout, cin // groups, ksize)
    scale, shift = _bn_params(cout)
    return _build_grouped_pack(w_pt, scale, shift, cin, cout, groups)


def make_bottleneck_params(key, in_planes, planes, groups, base_width, has_down):
    width = int(math.floor(planes * (base_width / 64.0))) * groups
    out_planes = planes * 4
    cin_p, w_p = _round_up(in_planes, 128), _round_up(width, 128)
    k0, k1, k2, k3 = jax.random.split(key, 4)
    p = {
        "conv1": _conv_bn_dense(k0, in_planes, width, 1, cin_stored=cin_p),
        "conv2": _conv_bn_grouped(k1, width, width, groups),
        "conv3": _conv_bn_dense(k2, width, out_planes, 1, cin_stored=w_p),
    }
    if has_down:
        p["down"] = _conv_bn_dense(k3, in_planes, out_planes, 1, cin_stored=cin_p)
    return p


def make_resnext1d_params(key, *, layers, in_channels=1, num_classes=1000,
                          groups=32, base_width=32, width_mult=1.0):
    c1 = int(64 * width_mult)
    c2 = int(128 * width_mult)
    c3 = int(256 * width_mult)
    c4 = int(512 * width_mult)
    keys = jax.random.split(key, 8)
    params = {"stem": _conv_bn_dense(keys[0], in_channels, c1, 7,
                                     cin_stored=in_channels)}
    in_planes = c1
    stages = []
    for si, (planes, blocks, stride) in enumerate(
            zip([c1, c2, c3, c4], layers, [1, 2, 2, 2])):
        out_planes = planes * 4
        skeys = jax.random.split(keys[1 + si], blocks)
        has_down = (stride != 1) or (in_planes != out_planes)
        blist = [make_bottleneck_params(skeys[0], in_planes, planes, groups,
                                        base_width, has_down)]
        in_planes = out_planes
        for bi in range(1, blocks):
            blist.append(make_bottleneck_params(skeys[bi], in_planes, planes,
                                                groups, base_width, False))
        stages.append(blist)
    params["stages"] = stages
    fc_in, fc_in_p = c4 * 4, _round_up(c4 * 4, 128)
    ncls_p = _round_up(num_classes, 128)
    kw, kb = jax.random.split(keys[5])
    bound = 1.0 / math.sqrt(fc_in)
    w = jax.random.uniform(kw, (fc_in, num_classes), jnp.float32, -bound, bound)
    params["fc_w"] = (jnp.zeros((fc_in_p, ncls_p), jnp.float32)
                      .at[:fc_in, :num_classes].set(w).astype(jnp.bfloat16))
    params["fc_b"] = jax.random.uniform(kb, (num_classes,), jnp.float32,
                                        -bound, bound)
    return params


# ---------------------------------------------------------------------------
# Forward pass
# ---------------------------------------------------------------------------
def bottleneck_forward(x, p, stride):
    if "down" in p:
        identity = conv1x1_bn_act(x, p["down"]["w"], p["down"]["shift"],
                                  stride=stride, act=False)
    else:
        identity = x
    out = conv1x1_bn_act(x, p["conv1"]["w"], p["conv1"]["shift"], act=True)
    out = grouped_conv_bn_relu(out, p["conv2"], stride=stride)
    # conv3 + BN + residual add + ReLU fused into one kernel
    out = conv1x1_bn_act(out, p["conv3"]["w"], p["conv3"]["shift"], act=True,
                         residual=identity)
    return out


def resnext1d_forward(params, x_ncl):
    x = jnp.transpose(x_ncl, (0, 2, 1)).astype(jnp.bfloat16)     # NCL -> NLC
    x = conv_im2col_bn_act(x, params["stem"]["w"], params["stem"]["shift"],
                           ksize=7, stride=2, padding=3, act=True)
    x = maxpool1d_k3_s2_p1(x)
    stage_strides = [1, 2, 2, 2]
    for si, stage in enumerate(params["stages"]):
        for bi, blk in enumerate(stage):
            x = bottleneck_forward(x, blk, stage_strides[si] if bi == 0 else 1)
    pooled = global_avgpool(x)                                    # (B, Cp) f32
    ncls = params["fc_b"].shape[0]
    ncls_p = params["fc_w"].shape[1]
    fc_shift = jnp.zeros((1, ncls_p), jnp.float32).at[0, :ncls].set(params["fc_b"])
    logits = matmul_bn_act(pooled.astype(jnp.bfloat16), params["fc_w"], fc_shift,
                           act=False, out_dtype=jnp.float32)
    return logits[:, :ncls]


# ---------------------------------------------------------------------------
# Lightweight numerical self-checks (exercise the multi-pack grouped paths)
# ---------------------------------------------------------------------------
def _self_check_matmul():
    k1, k2 = jax.random.split(jax.random.PRNGKey(2))
    x = jax.random.normal(k1, (48, 384), jnp.float32).astype(jnp.bfloat16)
    w = (0.05 * jax.random.normal(k2, (384, 256), jnp.float32)).astype(jnp.bfloat16)
    s = 0.01 * jnp.arange(256, dtype=jnp.float32).reshape(1, 256)
    got = matmul_bn_act(x, w, s, act=True, out_dtype=jnp.float32)
    ref = jnp.maximum(x.astype(jnp.float32) @ w.astype(jnp.float32) + s, 0.0)
    assert bool(jnp.allclose(got, ref, atol=0.1, rtol=0.1)), "matmul mismatch"


def _self_check_grouped():
    kx, kw = jax.random.split(jax.random.PRNGKey(1))
    B, L, C, groups = 1, 8, 256, 2
    x = jax.random.normal(kx, (B, L, C), jnp.float32).astype(jnp.bfloat16)
    w_pt = _kaiming_conv(kw, C, C // groups, 3)
    scale, shift = _bn_params(C)
    p = _build_grouped_pack(w_pt, scale, shift, C, C, groups)    # gp = 2 packs
    rhs = jnp.transpose(w_pt, (2, 1, 0))                         # (k, cin_g, cout)
    for stride in (1, 2):
        got = grouped_conv_bn_relu(x, p, stride=stride)[..., :C].astype(jnp.float32)
        ref = jax.lax.conv_general_dilated(
            x.astype(jnp.float32), rhs, window_strides=(stride,),
            padding=((1, 1),), dimension_numbers=("NWC", "WIO", "NWC"),
            feature_group_count=groups)
        ref = jnp.maximum(ref * scale + shift, 0.0)
        assert bool(jnp.allclose(got, ref, atol=0.1, rtol=0.1)), \
            f"grouped conv mismatch (stride={stride})"


# ---------------------------------------------------------------------------
if __name__ == "__main__":
    _self_check_matmul()
    _self_check_grouped()

    key = jax.random.PRNGKey(0)
    kx, kp = jax.random.split(key)

    # Small config: width_mult=0.125 -> c1..c4 = 8,16,32,64 ; groups=2, base_width=8
    B, C_IN, L = 2, 1, 64
    NUM_CLASSES = 10
    x = jax.random.normal(kx, (B, C_IN, L), jnp.float32)
    params = make_resnext1d_params(
        kp, layers=[1, 2, 1, 1], in_channels=C_IN, num_classes=NUM_CLASSES,
        groups=2, base_width=8, width_mult=0.125)

    logits = jax.jit(resnext1d_forward)(params, x)
    jax.block_until_ready(logits)
    assert logits.shape == (B, NUM_CLASSES)
    assert bool(jnp.all(jnp.isfinite(logits)))
    print("KERNEL_OK")
</pallas_src>

<mosaic_0001>
module attributes {stable_mosaic.version = 11 : i64} {
  func.func @_mm_kernel(%arg0: i32, %arg1: i32, %arg2: i32, %arg3: memref<48x384xbf16, #tpu.memory_space<vmem>>, %arg4: memref<384x128xbf16, #tpu.memory_space<vmem>>, %arg5: memref<1x128xf32, #tpu.memory_space<vmem>>, %arg6: memref<48x128xf32, #tpu.memory_space<vmem>>, %arg7: memref<48x128xf32, #tpu.memory_space<vmem>>) attributes {dimension_semantics = [#tpu.dimension_semantics<parallel>, #tpu.dimension_semantics<parallel>, #tpu.dimension_semantics<arbitrary>], iteration_bounds = array<i64: 1, 2, 1>, scalar_prefetch = 0 : i64, scratch_operands = 1 : i64, tpu.core_type = #tpu.core_type<tc>, window_params = [{transform_indices = @transform_0, window_bounds = array<i64: 48, 384>}, {transform_indices = @transform_1, window_bounds = array<i64: 384, 128>}, {transform_indices = @transform_2, window_bounds = array<i64: 1, 128>}, {transform_indices = @transform_3, window_bounds = array<i64: 48, 128>}]} {
    %c0_i32 = arith.constant 0 : i32
    %0 = arith.cmpi eq, %arg2, %c0_i32 : i32
    %1 = arith.extui %0 : i1 to i32
    %c0_i32_0 = arith.constant 0 : i32
    %2 = arith.cmpi ne, %1, %c0_i32_0 : i32
    scf.if %2 {
      %cst_10 = arith.constant 0.000000e+00 : f32
      %12 = vector.broadcast %cst_10 : f32 to vector<48x128xf32>
      %c0_11 = arith.constant 0 : index
      %c0_12 = arith.constant 0 : index
      %13 = vector.load %arg7[%c0_11, %c0_12] : memref<48x128xf32, #tpu.memory_space<vmem>>, vector<48x128xf32>
      tpu.vector_store %arg7[%c0_11, %c0_12], %12 {strides = array<i32>} : memref<48x128xf32, #tpu.memory_space<vmem>>, vector<48x128xf32>,
    } else {
    }
    %c0 = arith.constant 0 : index
    %c0_1 = arith.constant 0 : index
    %3 = vector.load %arg7[%c0, %c0_1] : memref<48x128xf32, #tpu.memory_space<vmem>>, vector<48x128xf32>
    %c0_2 = arith.constant 0 : index
    %c0_3 = arith.constant 0 : index
    %4 = vector.load %arg3[%c0_2, %c0_3] : memref<48x384xbf16, #tpu.memory_space<vmem>>, vector<48x384xbf16>
    %c0_4 = arith.constant 0 : index
    %c0_5 = arith.constant 0 : index
    %5 = vector.load %arg4[%c0_4, %c0_5] : memref<384x128xbf16, #tpu.memory_space<vmem>>, vector<384x128xbf16>
    %cst = arith.constant dense<0.000000e+00> : vector<48x128xf32>
    %6 = tpu.matmul %4, %5, %cst {dimension_numbers = #tpu.dot_dimension_numbers<[1], [0], [0], [1], [0, 0, 1, 1], [], []>} : vector<48x384xbf16>, vector<384x128xbf16>, vector<48x128xf32> -> vector<48x128xf32>
    %7 = arith.addf %3, %6 : vector<48x128xf32>
    %c0_6 = arith.constant 0 : index
    %c0_7 = arith.constant 0 : index
    %8 = vector.load %arg7[%c0_6, %c0_7] : memref<48x128xf32, #tpu.memory_space<vmem>>, vector<48x128xf32>
    tpu.vector_store %arg7[%c0_6, %c0_7], %7 {strides = array<i32>} : memref<48x128xf32, #tpu.memory_space<vmem>>, vector<48x128xf32>,
    %c0_i32_8 = arith.constant 0 : i32
    %9 = arith.cmpi eq, %arg2, %c0_i32_8 : i32
    %10 = arith.extui %9 : i1 to i32
    %c0_i32_9 = arith.constant 0 : i32
    %11 = arith.cmpi ne, %10, %c0_i32_9 : i32
    scf.if %11 {
      %c0_10 = arith.constant 0 : index
      %c0_11 = arith.constant 0 : index
      %12 = vector.load %arg7[%c0_10, %c0_11] : memref<48x128xf32, #tpu.memory_space<vmem>>, vector<48x128xf32>
      %c0_12 = arith.constant 0 : index
      %c0_13 = arith.constant 0 : index
      %13 = vector.load %arg5[%c0_12, %c0_13] : memref<1x128xf32, #tpu.memory_space<vmem>>, vector<1x128xf32>
      %14 = vector.broadcast %13 : vector<1x128xf32> to vector<48x128xf32>
      %15 = arith.addf %12, %14 : vector<48x128xf32>
      %cst_14 = arith.constant 0.000000e+00 : f32
      %16 = vector.broadcast %cst_14 : f32 to vector<48x128xf32>
      %17 = arith.maximumf %15, %16 : vector<48x128xf32>
      %c0_15 = arith.constant 0 : index
      %c0_16 = arith.constant 0 : index
      %18 = vector.load %arg6[%c0_15, %c0_16] : memref<48x128xf32, #tpu.memory_space<vmem>>, vector<48x128xf32>
      tpu.vector_store %arg6[%c0_15, %c0_16], %17 {strides = array<i32>} : memref<48x128xf32, #tpu.memory_space<vmem>>, vector<48x128xf32>,
    } else {
    }
    return
  }
  func.func @transform_0(%arg0: i32, %arg1: i32, %arg2: i32) -> (i32, i32) {
    %c0_i32 = arith.constant 0 : i32
    return %arg0, %arg2 : i32, i32
  }
  func.func @transform_1(%arg0: i32, %arg1: i32, %arg2: i32) -> (i32, i32) {
    %c0_i32 = arith.constant 0 : i32
    return %arg2, %arg1 : i32, i32
  }
  func.func @transform_2(%arg0: i32, %arg1: i32, %arg2: i32) -> (i32, i32) {
    %c0_i32 = arith.constant 0 : i32
    %c0_i32_0 = arith.constant 0 : i32
    return %c0_i32, %arg1 : i32, i32
  }
  func.func @transform_3(%arg0: i32, %arg1: i32, %arg2: i32) -> (i32, i32) {
    %c0_i32 = arith.constant 0 : i32
    return %arg0, %arg1 : i32, i32
  }
}

</mosaic_0001>

<llo_original>
// kernel: tpu_custom_call.1
$region0: #{tpu_custom_call.1}
  #allocation0 [shape = 'u32[]', space=smem, size = 0x4, offset = 0x4, fixed_abs, tag = 'smem constant byte address 0x4 - core index']
  #allocation1 [shape = 'u32[144,128]{1,0:T(1,128)}', space=vmem, size = 0x12000, scoped, tag = 'internal scratch']
  #allocation2 [shape = 'f32[48,128]{1,0:T(8,128)}', space=vmem, size = 0x6000, scoped, tag = 'scratch operand']
  %s0 = inlined_call_operand.hbm [shape: bf16[48,384], index: 0, kind: input, shape index: {}]
  %s1 = inlined_call_operand.hbm [shape: bf16[384,256], index: 1, kind: input, shape index: {}]
  %s2 = inlined_call_operand.vmem [shape: f32[1,256], index: 2, kind: input, shape index: {}]
  %s3 = inlined_call_operand.hbm [shape: f32[48,256], index: 3, kind: output, shape index: {}]
  %s4 = sld [smem:[#allocation0]]
  $region61: #{tpu_custom_call.1} parent=0
    _
  %s6 = ssub.s32 1, %s4
  %s7 = scalar_select 0, %s6, %s4
  $region1: #{tpu_custom_call.1} parent=0
    #allocation3 [shape = 'u8[36864]{0}', space=vmem, size = 0x9000, scoped, tag = 'input window, operand 0, single buffered']
    #allocation4 [shape = 's32[2]{0}', space=sflag, size = 0x8, scoped, tag = 'scoped memory for tpu_custom_call.1']
    #allocation5 [shape = 's32[2]{0}', space=sflag, size = 0x8, scoped, tag = 'scoped memory for tpu_custom_call.1']
    #allocation6 [shape = 'u8[196608]{0}', space=vmem, size = 0x30000, scoped, tag = 'input window, operand 1']
    #allocation7 [shape = 's32[2]{0}', space=sflag, size = 0x8, scoped, tag = 'scoped memory for tpu_custom_call.1']
    #allocation8 [shape = 'u8[49152]{0}', space=vmem, size = 0xc000, scoped, tag = 'output window, operand 0']
    %8 = vsyncpa [#allocation4], 0
    %9 = vsyncpa [#allocation7], 0
    %s10 = scalar_lea.sflag [#allocation7], 1
    %11 = vsyncpa %s10, 0
    %12 = vsyncpa [#allocation5], 0
    %s13 = scalar_lea.sflag [#allocation5], 1
    %14 = vsyncpa %s13, 0
    loop: start=0, step=1, limit=4
    $region2: #{tpu_custom_call.1} parent=1 // loop_pre_header
      _
    $region3: #{tpu_custom_call.1} parent=1 // loop_header
      %s16 = sphi 0, %s20
      %p17 = scmp.ge.s32.totalorder %s16, 4
      %s23 = sphi 0, %s42
      %s24 = sphi 0, %s38
      %s25 = sphi 0, %s34
      %s26 = sphi 0, %s23
      %s27 = sphi 0, %s24
      %s28 = sphi 0, %s25
      %s29 = sphi 0, %s26
      %s30 = sphi 0, %s27
      %s31 = sphi 0, %s28
      %s47 = sphi 0, %s49
      %s50 = sphi 0, %s47
      %s51 = sphi 0, %s50
      %s67 = sphi 0, %s51
      %s75 = sphi 0, %s77
      %s78 = sphi 0, %s75
      %s79 = sphi 0, %s78
      %s95 = sphi 0, %s79
      %s101 = sphi 0, %s103
      %s104 = sphi 0, %s101
      %s105 = sphi 0, %s104
      %s121 = sphi 0, %s105
      %s129 = sphi 0, %s131
      %s132 = sphi 0, %s129
      %s133 = sphi 0, %s132
      %s149 = sphi 0, %s133
    $region4: #{tpu_custom_call.1} parent=1 // loop_header_branch
      %19 = sbr.rel (%p17) target = $region8
    $region5: #{tpu_custom_call.1} parent=1 // loop_body
      %s21 = ssub.s32 %s16, 1
      %s22 = ssub.s32 %s16, 2
      %s32 = sadd.s32 1, %s25
      %p33 = scmp.ge.s32.totalorder %s32, 1
      %s34 = scalar_select %p33, 0, %s32
      %s35 = sadd.s32 1, %s24
      %s36 = scalar_select %p33, %s35, %s24
      %p37 = scmp.ge.s32.totalorder %s36, 2
      %s38 = scalar_select %p37, 0, %s36
      %s39 = sadd.s32 1, %s23
      %s40 = scalar_select %p37, %s39, %s23
      %p41 = scmp.ge.s32.totalorder %s40, 1
      %s42 = scalar_select %p41, 0, %s40
      %s43 = ssub.s32 %s23, %s42
      %s44 = ssub.s32 %s25, %s34
      %s45 = sor.u32 %s43, %s44
      %p46 = scmp.eq.s32.totalorder %s45, 0
      %s48 = sadd.s32 %s47, 1
      %s49 = scalar_select %p46, %s47, %s48
      %p52 = pneg %p46
      %p53 = scmp.eq.s32.totalorder %s16, 1
      %p54 = por %p52, %p53
      %p55 = scmp.ne.s32.totalorder %s47, %s50
      %p56 = scmp.eq.s32.totalorder %s16, 0
      %p57 = por %p55, %p56
      %p58 = scmp.ne.s32.totalorder %s47, %s50
      %p59 = scmp.eq.s32.totalorder %s21, 1
      %p60 = por %p58, %p59
      %p61 = scmp.ne.s32.totalorder %s50, %s51
      %p62 = scmp.eq.s32.totalorder %s21, 0
      %p63 = por %p61, %p62
      %p64 = scmp.ne.s32.totalorder %s50, %s51
      %p65 = scmp.eq.s32.totalorder %s22, 1
      %p66 = por %p64, %p65
      %p68 = scmp.ne.s32.totalorder %s51, %s67
      %p69 = scmp.eq.s32.totalorder %s22, 0
      %p70 = por %p68, %p69
      %s71 = ssub.s32 %s25, %s34
      %s72 = ssub.s32 %s24, %s38
      %s73 = sor.u32 %s71, %s72
      %p74 = scmp.eq.s32.totalorder %s73, 0
      %s76 = sadd.s32 %s75, 1
      %s77 = scalar_select %p74, %s75, %s76
      %p80 = pneg %p74
      %p81 = scmp.eq.s32.totalorder %s16, 1
      %p82 = por %p80, %p81
      %p83 = scmp.ne.s32.totalorder %s75, %s78
      %p84 = scmp.eq.s32.totalorder %s16, 0
      %p85 = por %p83, %p84
      %p86 = scmp.ne.s32.totalorder %s75, %s78
      %p87 = scmp.eq.s32.totalorder %s21, 1
      %p88 = por %p86, %p87
      %p89 = scmp.ne.s32.totalorder %s78, %s79
      %p90 = scmp.eq.s32.totalorder %s21, 0
      %p91 = por %p89, %p90
      %p92 = scmp.ne.s32.totalorder %s78, %s79
      %p93 = scmp.eq.s32.totalorder %s22, 1
      %p94 = por %p92, %p93
      %p96 = scmp.ne.s32.totalorder %s79, %s95
      %p97 = scmp.eq.s32.totalorder %s22, 0
      %p98 = por %p96, %p97
      %s99 = ssub.s32 %s24, %s38
      %p100 = scmp.eq.s32.totalorder %s99, 0
      %s102 = sadd.s32 %s101, 1
      %s103 = scalar_select %p100, %s101, %s102
      %p106 = pneg %p100
      %p107 = scmp.eq.s32.totalorder %s16, 1
      %p108 = por %p106, %p107
      %p109 = scmp.ne.s32.totalorder %s101, %s104
      %p110 = scmp.eq.s32.totalorder %s16, 0
      %p111 = por %p109, %p110
      %p112 = scmp.ne.s32.totalorder %s101, %s104
      %p113 = scmp.eq.s32.totalorder %s21, 1
      %p114 = por %p112, %p113
      %p115 = scmp.ne.s32.totalorder %s104, %s105
      %p116 = scmp.eq.s32.totalorder %s21, 0
      %p117 = por %p115, %p116
      %p118 = scmp.ne.s32.totalorder %s104, %s105
      %p119 = scmp.eq.s32.totalorder %s22, 1
      %p120 = por %p118, %p119
      %p122 = scmp.ne.s32.totalorder %s105, %s121
      %p123 = scmp.eq.s32.totalorder %s22, 0
      %p124 = por %p122, %p123
      %s125 = ssub.s32 %s23, %s42
      %s126 = ssub.s32 %s24, %s38
      %s127 = sor.u32 %s125, %s126
      %p128 = scmp.eq.s32.totalorder %s127, 0
      %s130 = sadd.s32 %s129, 1
      %s131 = scalar_select %p128, %s129, %s130
      %p134 = pneg %p128
      %p135 = scmp.eq.s32.totalorder %s16, 1
      %p136 = por %p134, %p135
      %p137 = scmp.ne.s32.totalorder %s129, %s132
      %p138 = scmp.eq.s32.totalorder %s16, 0
      %p139 = por %p137, %p138
      %p140 = scmp.ne.s32.totalorder %s129, %s132
      %p141 = scmp.eq.s32.totalorder %s21, 1
      %p142 = por %p140, %p141
      %p143 = scmp.ne.s32.totalorder %s132, %s133
      %p144 = scmp.eq.s32.totalorder %s21, 0
      %p145 = por %p143, %p144
      %p146 = scmp.ne.s32.totalorder %s132, %s133
      %p147 = scmp.eq.s32.totalorder %s22, 1
      %p148 = por %p146, %p147
      %p150 = scmp.ne.s32.totalorder %s133, %s149
      %p151 = scmp.eq.s32.totalorder %s22, 0
      %p152 = por %p150, %p151
      %p153 = scmp.le.s32.totalorder 1, %s16
      %p154 = scmp.lt.s32.totalorder %s16, 3
      %p155 = pnand %p153, %p154
      %p156 = pneg %p155
      // Predicated region
      $region9: #{tpu_custom_call.1} parent=5 // pred_check
        _
      $region10: #{tpu_custom_call.1} parent=5 // pred_check_branch
        %158 = sbr.rel (%p155) target = $region12
      $region11: #{tpu_custom_call.1} parent=5 // pred_region
        %s159 = ssub.s32 %s16, 1
        // Predicated region
        $region13: #{tpu_custom_call.1} parent=11 // pred_check
          %p160 = pneg %p63
        $region14: #{tpu_custom_call.1} parent=11 // pred_check_branch
          %162 = sbr.rel (%p160) target = $region16
        $region15: #{tpu_custom_call.1} parent=11 // pred_region
          %s163 = smul.u32 6, %s26
          %s164 = smul.u32 3, %s28
          %s166 = ssub.s32 1152, 1152
          %167 = vsyncadd [#allocation4], %s166
          %s168 = smul.addr %s163, 3
          %s169 = sadd.s32 %s164, %s168
          %s170 = smul.addr %s169, 64
          %s171 = scalar_lea.hbm %s0, %s170
          %s172 = sshll.u32 [#allocation3], 4
          %s173 = int_to_ptr.vmem [resolvable:$true] %s172
          %178 = dma.hbm_to_vmem [thread:$0]  %s171, 1152, %s173, [#allocation4], 192, 192, 12
        $region16: #{tpu_custom_call.1} parent=11 // pred_fallthru
          _
      $region12: #{tpu_custom_call.1} parent=5 // pred_fallthru
        _
      %p179 = scmp.lt.s32.totalorder %s16, 2
      // Predicated region
      $region17: #{tpu_custom_call.1} parent=5 // pred_check
        %p180 = pneg %p179
      $region18: #{tpu_custom_call.1} parent=5 // pred_check_branch
        %182 = sbr.rel (%p180) target = $region20
      $region19: #{tpu_custom_call.1} parent=5 // pred_region
        // Predicated region
        $region21: #{tpu_custom_call.1} parent=19 // pred_check
          %p183 = pneg %p85
        $region22: #{tpu_custom_call.1} parent=19 // pred_check_branch
          %185 = sbr.rel (%p183) target = $region24
        $region23: #{tpu_custom_call.1} parent=19 // pred_region
          %s186 = sand.u32 %s75, 1
          %s187 = scalar_lea.sflag [#allocation7], %s186
          %s188 = sand.u32 %s75, 1
          %s189 = smul.addr %s188, 192
          %s190 = scalar_lea.vmem [#allocation6], %s189
          %s191 = smul.u32 48, %s25
          %s193 = ssub.s32 3072, 3072
          %194 = vsyncadd %s187, %s193
          %s195 = smul.addr %s191, 2
          %s196 = sadd.s32 %s24, %s195
          %s197 = smul.addr %s196, 64
          %s198 = scalar_lea.hbm %s1, %s197
          %s199 = sshll.u32 %s190, 4
          %s200 = int_to_ptr.vmem [resolvable:$true] %s199
          %205 = dma.hbm_to_vmem [thread:$0]  %s198, 3072, %s200, %s187, 128, 64, 4
        $region24: #{tpu_custom_call.1} parent=19 // pred_fallthru
          _
        // Predicated region
        $region25: #{tpu_custom_call.1} parent=19 // pred_check
          %p206 = pneg %p111
        $region26: #{tpu_custom_call.1} parent=19 // pred_check_branch
          %208 = sbr.rel (%p206) target = $region28
        $region27: #{tpu_custom_call.1} parent=19 // pred_region
          %p209 = scmp.lt.s32.totalorder %s24, 1
          %s210 = scalar_select %p209, %s24, 1
          %s211 = scalar_lea.vmem %s2, %s210
        $region28: #{tpu_custom_call.1} parent=19 // pred_fallthru
          _
      $region20: #{tpu_custom_call.1} parent=5 // pred_fallthru
        _
      %p212 = scmp.le.s32.totalorder 1, %s16
      %p213 = scmp.lt.s32.totalorder %s16, 3
      %p214 = pnand %p212, %p213
      %p215 = pneg %p214
      // Predicated region
      $region29: #{tpu_custom_call.1} parent=5 // pred_check
        _
      $region30: #{tpu_custom_call.1} parent=5 // pred_check_branch
        %217 = sbr.rel (%p214) target = $region32
      $region31: #{tpu_custom_call.1} parent=5 // pred_region
        %s218 = ssub.s32 %s16, 1
        // Predicated region
        $region33: #{tpu_custom_call.1} parent=31 // pred_check
          %p219 = pneg %p63
        $region34: #{tpu_custom_call.1} parent=31 // pred_check_branch
          %221 = sbr.rel (%p219) target = $region36
        $region35: #{tpu_custom_call.1} parent=31 // pred_region
          %222 = dma.done [#allocation4], 1152
        $region36: #{tpu_custom_call.1} parent=31 // pred_fallthru
          _
        %s223 = sand.u32 %s78, 1
        %s224 = scalar_lea.sflag [#allocation7], %s223
        %s225 = sand.u32 %s78, 1
        %s226 = smul.addr %s225, 192
        %s227 = scalar_lea.vmem [#allocation6], %s226
        // Predicated region
        $region37: #{tpu_custom_call.1} parent=31 // pred_check
          %p228 = pneg %p91
        $region38: #{tpu_custom_call.1} parent=31 // pred_check_branch
          %230 = sbr.rel (%p228) target = $region40
        $region39: #{tpu_custom_call.1} parent=31 // pred_region
          %231 = dma.done %s224, 3072
        $region40: #{tpu_custom_call.1} parent=31 // pred_fallthru
          _
        %p232 = pneg %p63
        %p233 = pneg %p60
        %s234 = sand.u32 %s78, 1
        %s235 = scalar_lea.sflag [#allocation7], %s234
        %s236 = sand.u32 %s78, 1
        %s237 = smul.addr %s236, 192
        %s238 = scalar_lea.vmem [#allocation6], %s237
        %p239 = pneg %p91
        %p240 = pneg %p88
        %p241 = scmp.lt.s32.totalorder %s27, 1
        %s242 = scalar_select %p241, %s27, 1
        %s243 = scalar_lea.vmem %s2, %s242
        %p244 = pneg %p117
        %p245 = pneg %p114
        %p246 = pneg %p145
        %p247 = pneg %p142
        %s248 = sand.u32 %s132, 1
        %s249 = scalar_lea.sflag [#allocation5], %s248
        %s250 = sand.u32 %s132, 1
        %s251 = smul.addr %s250, 48
        %s252 = scalar_lea.vmem [#allocation8], %s251
        %s253 = smul.u32 6, %s26
        %s254 = smul.u32 3, %s28
        %s255 = smul.u32 48, %s28
        %p256 = scmp.lt.s32.totalorder %s27, 1
        %s257 = scalar_select %p256, %s27, 1
        %s258 = scalar_lea.vmem %s2, %s257
        %s259 = smul.u32 6, %s26
        %p261 = scmp.eq.s32.totalorder %s28, 0
        // Predicated region
        $region41: #{tpu_custom_call.1} parent=31 // pred_check
          %p262 = pneg %p261
        $region42: #{tpu_custom_call.1} parent=31 // pred_check_branch
          %264 = sbr.rel (%p262) target = $region44
        $region43: #{tpu_custom_call.1} parent=31 // pred_region
          %265 = vst [vmem:[#allocation2] sm:$0xff] 0.0
          %266 = vst [vmem:[#allocation2 + $0x8] sm:$0xff] 0.0
          %267 = vst [vmem:[#allocation2 + $0x10] sm:$0xff] 0.0
          %268 = vst [vmem:[#allocation2 + $0x18] sm:$0xff] 0.0
          %269 = vst [vmem:[#allocation2 + $0x20] sm:$0xff] 0.0
          %270 = vst [vmem:[#allocation2 + $0x28] sm:$0xff] 0.0
        $region44: #{tpu_custom_call.1} parent=31 // pred_fallthru
          _
        %v271 = vld [vmem:[#allocation2] sm:$0xff]
        %v272 = vld [vmem:[#allocation2 + $0x8] sm:$0xff]
        %v273 = vld [vmem:[#allocation2 + $0x10] sm:$0xff]
        %v274 = vld [vmem:[#allocation2 + $0x18] sm:$0xff]
        %v275 = vld [vmem:[#allocation2 + $0x20] sm:$0xff]
        %v276 = vld [vmem:[#allocation2 + $0x28] sm:$0xff]
        %v277 = vld [vmem:[#allocation3] sm:$0xff]
        %v278 = vld [vmem:[#allocation3 + $0x8] sm:$0xf]
        %v279 = vld [vmem:[#allocation3 + $0xc] sm:$0xff]
        %v280 = vld [vmem:[#allocation3 + $0x14] sm:$0xf]
        %v281 = vld [vmem:[#allocation3 + $0x18] sm:$0xff]
        %v282 = vld [vmem:[#allocation3 + $0x20] sm:$0xf]
        %v283 = vld [vmem:[#allocation3 + $0x24] sm:$0xff]
        %v284 = vld [vmem:[#allocation3 + $0x2c] sm:$0xf]
        %v285 = vld [vmem:[#allocation3 + $0x30] sm:$0xff]
        %v286 = vld [vmem:[#allocation3 + $0x38] sm:$0xf]
        %v287 = vld [vmem:[#allocation3 + $0x3c] sm:$0xff]
        %v288 = vld [vmem:[#allocation3 + $0x44] sm:$0xf]
        %v289 = vld [vmem:[%s227] sm:$0xf]
        %v290 = vld [vmem:[%s227 + $0x4] sm:$0xf]
        %v291 = vld [vmem:[%s227 + $0x8] sm:$0xf]
        %v292 = vld [vmem:[%s227 + $0xc] sm:$0xf]
        %v293 = vld [vmem:[%s227 + $0x10] sm:$0xf]
        %v294 = vld [vmem:[%s227 + $0x14] sm:$0xf]
        %v295 = vld [vmem:[%s227 + $0x18] sm:$0xf]
        %v296 = vld [vmem:[%s227 + $0x1c] sm:$0xf]
        %v297 = vld [vmem:[%s227 + $0x20] sm:$0xf]
        %v298 = vld [vmem:[%s227 + $0x24] sm:$0xf]
        %v299 = vld [vmem:[%s227 + $0x28] sm:$0xf]
        %v300 = vld [vmem:[%s227 + $0x2c] sm:$0xf]
        %v301 = vld [vmem:[%s227 + $0x30] sm:$0xf]
        %v302 = vld [vmem:[%s227 + $0x34] sm:$0xf]
        %v303 = vld [vmem:[%s227 + $0x38] sm:$0xf]
        %v304 = vld [vmem:[%s227 + $0x3c] sm:$0xf]
        %v305 = vld [vmem:[%s227 + $0x40] sm:$0xf]
        %v306 = vld [vmem:[%s227 + $0x44] sm:$0xf]
        %v307 = vld [vmem:[%s227 + $0x48] sm:$0xf]
        %v308 = vld [vmem:[%s227 + $0x4c] sm:$0xf]
        %v309 = vld [vmem:[%s227 + $0x50] sm:$0xf]
        %v310 = vld [vmem:[%s227 + $0x54] sm:$0xf]
        %v311 = vld [vmem:[%s227 + $0x58] sm:$0xf]
        %v312 = vld [vmem:[%s227 + $0x5c] sm:$0xf]
        %v313 = vld [vmem:[%s227 + $0x60] sm:$0xf]
        %v314 = vld [vmem:[%s227 + $0x64] sm:$0xf]
        %v315 = vld [vmem:[%s227 + $0x68] sm:$0xf]
        %v316 = vld [vmem:[%s227 + $0x6c] sm:$0xf]
        %v317 = vld [vmem:[%s227 + $0x70] sm:$0xf]
        %v318 = vld [vmem:[%s227 + $0x74] sm:$0xf]
        %v319 = vld [vmem:[%s227 + $0x78] sm:$0xf]
        %v320 = vld [vmem:[%s227 + $0x7c] sm:$0xf]
        %v321 = vld [vmem:[%s227 + $0x80] sm:$0xf]
        %v322 = vld [vmem:[%s227 + $0x84] sm:$0xf]
        %v323 = vld [vmem:[%s227 + $0x88] sm:$0xf]
        %v324 = vld [vmem:[%s227 + $0x8c] sm:$0xf]
        %v325 = vld [vmem:[%s227 + $0x90] sm:$0xf]
        %v326 = vld [vmem:[%s227 + $0x94] sm:$0xf]
        %v327 = vld [vmem:[%s227 + $0x98] sm:$0xf]
        %v328 = vld [vmem:[%s227 + $0x9c] sm:$0xf]
        %v329 = vld [vmem:[%s227 + $0xa0] sm:$0xf]
        %v330 = vld [vmem:[%s227 + $0xa4] sm:$0xf]
        %v331 = vld [vmem:[%s227 + $0xa8] sm:$0xf]
        %v332 = vld [vmem:[%s227 + $0xac] sm:$0xf]
        %v333 = vld [vmem:[%s227 + $0xb0] sm:$0xf]
        %v334 = vld [vmem:[%s227 + $0xb4] sm:$0xf]
        %v335 = vld [vmem:[%s227 + $0xb8] sm:$0xf]
        %v336 = vld [vmem:[%s227 + $0xbc] sm:$0xf]
        %v349 = vunpack.c.l.b16 %v277
        %v350 = vunpack.c.h.b16 %v277
        %v351 = vunpack.c.l.b16 %v278
        %v352 = vunpack.c.l.b16 %v279
        %v353 = vunpack.c.h.b16 %v279
        %v354 = vunpack.c.l.b16 %v280
        %v355 = vunpack.c.l.b16 %v281
        %v356 = vunpack.c.h.b16 %v281
        %v357 = vunpack.c.l.b16 %v282
        %v358 = vunpack.c.l.b16 %v283
        %v359 = vunpack.c.h.b16 %v283
        %v360 = vunpack.c.l.b16 %v284
        %v361 = vunpack.c.l.b16 %v285
        %v362 = vunpack.c.h.b16 %v285
        %v363 = vunpack.c.l.b16 %v286
        %v364 = vunpack.c.l.b16 %v287
        %v365 = vunpack.c.h.b16 %v287
        %v366 = vunpack.c.l.b16 %v288
        %v367 = vpack.c.b16 %v352, %v349
        %v368 = vpack.c.b16 %v353, %v350
        %v369 = vpack.c.b16 %v354, %v351
        %v370 = vpack.c.b16 %v358, %v355
        %v371 = vpack.c.b16 %v359, %v356
        %v372 = vpack.c.b16 %v360, %v357
        %v373 = vpack.c.b16 %v364, %v361
        %v374 = vpack.c.b16 %v365, %v362
        %v375 = vpack.c.b16 %v366, %v363
        %v433 = vunpack.c.l.b16 %v289
        %v434 = vunpack.c.l.b16 %v290
        %v435 = vunpack.c.l.b16 %v291
        %v436 = vunpack.c.l.b16 %v292
        %v437 = vunpack.c.l.b16 %v293
        %v438 = vunpack.c.l.b16 %v294
        %v439 = vunpack.c.l.b16 %v295
        %v440 = vunpack.c.l.b16 %v296
        %v441 = vunpack.c.l.b16 %v297
        %v442 = vunpack.c.l.b16 %v298
        %v443 = vunpack.c.l.b16 %v299
        %v444 = vunpack.c.l.b16 %v300
        %v445 = vunpack.c.l.b16 %v301
        %v446 = vunpack.c.l.b16 %v302
        %v447 = vunpack.c.l.b16 %v303
        %v448 = vunpack.c.l.b16 %v304
        %v449 = vunpack.c.l.b16 %v305
        %v450 = vunpack.c.l.b16 %v306
        %v451 = vunpack.c.l.b16 %v307
        %v452 = vunpack.c.l.b16 %v308
        %v453 = vunpack.c.l.b16 %v309
        %v454 = vunpack.c.l.b16 %v310
        %v455 = vunpack.c.l.b16 %v311
        %v456 = vunpack.c.l.b16 %v312
        %v457 = vunpack.c.l.b16 %v313
        %v458 = vunpack.c.l.b16 %v314
        %v459 = vunpack.c.l.b16 %v315
        %v460 = vunpack.c.l.b16 %v316
        %v461 = vunpack.c.l.b16 %v317
        %v462 = vunpack.c.l.b16 %v318
        %v463 = vunpack.c.l.b16 %v319
        %v464 = vunpack.c.l.b16 %v320
        %v465 = vunpack.c.l.b16 %v321
        %v466 = vunpack.c.l.b16 %v322
        %v467 = vunpack.c.l.b16 %v323
        %v468 = vunpack.c.l.b16 %v324
        %v469 = vunpack.c.l.b16 %v325
        %v470 = vunpack.c.l.b16 %v326
        %v471 = vunpack.c.l.b16 %v327
        %v472 = vunpack.c.l.b16 %v328
        %v473 = vunpack.c.l.b16 %v329
        %v474 = vunpack.c.l.b16 %v330
        %v475 = vunpack.c.l.b16 %v331
        %v476 = vunpack.c.l.b16 %v332
        %v477 = vunpack.c.l.b16 %v333
        %v478 = vunpack.c.l.b16 %v334
        %v479 = vunpack.c.l.b16 %v335
        %v480 = vunpack.c.l.b16 %v336
        %v481 = vpack.c.b16 %v434, %v433
        %v482 = vpack.c.b16 %v436, %v435
        %v483 = vpack.c.b16 %v438, %v437
        %v484 = vpack.c.b16 %v440, %v439
        %v485 = vpack.c.b16 %v442, %v441
        %v486 = vpack.c.b16 %v444, %v443
        %v487 = vpack.c.b16 %v446, %v445
        %v488 = vpack.c.b16 %v448, %v447
        %v489 = vpack.c.b16 %v450, %v449
        %v490 = vpack.c.b16 %v452, %v451
        %v491 = vpack.c.b16 %v454, %v453
        %v492 = vpack.c.b16 %v456, %v455
        %v493 = vpack.c.b16 %v458, %v457
        %v494 = vpack.c.b16 %v460, %v459
        %v495 = vpack.c.b16 %v462, %v461
        %v496 = vpack.c.b16 %v464, %v463
        %v497 = vpack.c.b16 %v466, %v465
        %v498 = vpack.c.b16 %v468, %v467
        %v499 = vpack.c.b16 %v470, %v469
        %v500 = vpack.c.b16 %v472, %v471
        %v501 = vpack.c.b16 %v474, %v473
        %v502 = vpack.c.b16 %v476, %v475
        %v503 = vpack.c.b16 %v478, %v477
        %v504 = vpack.c.b16 %v480, %v479
        %529 = vmatprep.subr.bf16.mxu0 0
        %530 = vmatpush1.bf16.msra.mxu0 %v488
        %531 = vmatprep.subr.bf16.mxu0 0
        %532 = vmatpush1.bf16.msra.mxu0 %v487
        %533 = vmatprep.subr.bf16.mxu0 0
        %534 = vmatpush1.bf16.msra.mxu0 %v486
        %535 = vmatprep.subr.bf16.mxu0 0
        %536 = vmatpush1.bf16.msra.mxu0 %v485
        %537 = vmatprep.subr.bf16.mxu0 0
        %538 = vmatpush1.bf16.msra.mxu0 %v484
        %539 = vmatprep.subr.bf16.mxu0 0
        %540 = vmatpush1.bf16.msra.mxu0 %v483
        %541 = vmatprep.subr.bf16.mxu0 0
        %542 = vmatpush1.bf16.msra.mxu0 %v482
        %543 = vmatprep.subr.bf16.mxu0 0
        %544 = vmatpush1.bf16.msra.mxu0 %v481
        %545 = vmatprep.subr.bf16.mxu0 0
        %546 = vmatpush2.bf16.msra.mxu0 %v496
        %547 = vmatprep.subr.bf16.mxu0 0
        %548 = vmatpush2.bf16.msra.mxu0 %v495
        %549 = vmatprep.subr.bf16.mxu0 0
        %550 = vmatpush2.bf16.msra.mxu0 %v494
        %551 = vmatprep.subr.bf16.mxu0 0
        %552 = vmatpush2.bf16.msra.mxu0 %v493
        %553 = vmatprep.subr.bf16.mxu0 0
        %554 = vmatpush2.bf16.msra.mxu0 %v492
        %555 = vmatprep.subr.bf16.mxu0 0
        %556 = vmatpush2.bf16.msra.mxu0 %v491
        %557 = vmatprep.subr.bf16.mxu0 0
        %558 = vmatpush2.bf16.msra.mxu0 %v490
        %559 = vmatprep.subr.bf16.mxu0 0
        %560 = vmatpush2.bf16.msra.mxu0 %v489
        %561 = vmatprep.mubr.bf16.mxu0 %v368
        %562 = vmatmul.mubr.bf16.gmra.mxu0 %v367
        %v563 = vpop.f32.mrf.mxu0
        %v564 = vadd.f32 0.0, %v563
        %v565 = vpop.f32.mrf.mxu0
        %v566 = vpop.f32.mrf.mxu0
        %v567 = vadd.f32 0.0, %v566
        %v568 = vpop.f32.mrf.mxu0
        %569 = vmatprep.mubr.bf16.mxu0 %v371
        %570 = vmatmul.mubr.bf16.gmra.mxu0 %v370
        %v571 = vpop.f32.mrf.mxu0
        %v572 = vadd.f32 0.0, %v571
        %v573 = vpop.f32.mrf.mxu0
        %v574 = vpop.f32.mrf.mxu0
        %v575 = vadd.f32 0.0, %v574
        %v576 = vpop.f32.mrf.mxu0
        %577 = vmatprep.mubr.bf16.mxu0 %v374
        %578 = vmatmul.mubr.bf16.gmra.mxu0 %v373
        %v579 = vpop.f32.mrf.mxu0
        %v580 = vadd.f32 0.0, %v579
        %v581 = vpop.f32.mrf.mxu0
        %v582 = vpop.f32.mrf.mxu0
        %v583 = vadd.f32 0.0, %v582
        %v584 = vpop.f32.mrf.mxu0
        %585 = vdwg.mxu0
        %586 = vmatprep.subr.bf16.mxu0 0
        %587 = vmatpush1.bf16.msra.mxu0 %v504
        %588 = vmatprep.subr.bf16.mxu0 0
        %589 = vmatpush1.bf16.msra.mxu0 %v503
        %590 = vmatprep.subr.bf16.mxu0 0
        %591 = vmatpush1.bf16.msra.mxu0 %v502
        %592 = vmatprep.subr.bf16.mxu0 0
        %593 = vmatpush1.bf16.msra.mxu0 %v501
        %594 = vmatprep.subr.bf16.mxu0 0
        %595 = vmatpush1.bf16.msra.mxu0 %v500
        %596 = vmatprep.subr.bf16.mxu0 0
        %597 = vmatpush1.bf16.msra.mxu0 %v499
        %598 = vmatprep.subr.bf16.mxu0 0
        %599 = vmatpush1.bf16.msra.mxu0 %v498
        %600 = vmatprep.subr.bf16.mxu0 0
        %601 = vmatpush1.bf16.msra.mxu0 %v497
        %602 = vmatprep.subr.bf16.mxu0 0
        %603 = vmatpush2.bf16.msra.mxu0 0
        %604 = vmatprep.subr.bf16.mxu0 0
        %605 = vmatpush2.bf16.msra.mxu0 0
        %606 = vmatprep.subr.bf16.mxu0 0
        %607 = vmatpush2.bf16.msra.mxu0 0
        %608 = vmatprep.subr.bf16.mxu0 0
        %609 = vmatpush2.bf16.msra.mxu0 0
        %610 = vmatprep.subr.bf16.mxu0 0
        %611 = vmatpush2.bf16.msra.mxu0 0
        %612 = vmatprep.subr.bf16.mxu0 0
        %613 = vmatpush2.bf16.msra.mxu0 0
        %614 = vmatprep.subr.bf16.mxu0 0
        %615 = vmatpush2.bf16.msra.mxu0 0
        %616 = vmatprep.subr.bf16.mxu0 0
        %617 = vmatpush2.bf16.msra.mxu0 0
        %618 = vmatprep.mubr.bf16.mxu0 0
        %619 = vmatmul.mubr.bf16.gmra.mxu0 %v369
        %v620 = vpop.f32.mrf.mxu0
        %v621 = vadd.f32 %v564, %v620
        %v622 = vpop.f32.mrf.mxu0
        %v623 = vpop.f32.mrf.mxu0
        %v624 = vadd.f32 %v567, %v623
        %v625 = vpop.f32.mrf.mxu0
        %626 = vmatprep.mubr.bf16.mxu0 0
        %627 = vmatmul.mubr.bf16.gmra.mxu0 %v372
        %v628 = vpop.f32.mrf.mxu0
        %v629 = vadd.f32 %v572, %v628
        %v630 = vpop.f32.mrf.mxu0
        %v631 = vpop.f32.mrf.mxu0
        %v632 = vadd.f32 %v575, %v631
        %v633 = vpop.f32.mrf.mxu0
        %634 = vmatprep.mubr.bf16.mxu0 0
        %635 = vmatmul.mubr.bf16.gmra.mxu0 %v375
        %v636 = vpop.f32.mrf.mxu0
        %v637 = vadd.f32 %v580, %v636
        %v638 = vpop.f32.mrf.mxu0
        %v639 = vpop.f32.mrf.mxu0
        %v640 = vadd.f32 %v583, %v639
        %v641 = vpop.f32.mrf.mxu0
        %642 = vdwg.mxu0
        %v643 = vadd.f32 %v271, %v621
        %v644 = vadd.f32 %v272, %v624
        %v645 = vadd.f32 %v273, %v629
        %v646 = vadd.f32 %v274, %v632
        %v647 = vadd.f32 %v275, %v637
        %v648 = vadd.f32 %v276, %v640
        %649 = vst [vmem:[#allocation2] sm:$0xff] %v643
        %650 = vst [vmem:[#allocation2 + $0x8] sm:$0xff] %v644
        %651 = vst [vmem:[#allocation2 + $0x10] sm:$0xff] %v645
        %652 = vst [vmem:[#allocation2 + $0x18] sm:$0xff] %v646
        %653 = vst [vmem:[#allocation2 + $0x20] sm:$0xff] %v647
        %654 = vst [vmem:[#allocation2 + $0x28] sm:$0xff] %v648
        // Predicated region
        $region45: #{tpu_custom_call.1} parent=31 // pred_check
          %p655 = pneg %p261
        $region46: #{tpu_custom_call.1} parent=31 // pred_check_branch
          %657 = sbr.rel (%p655) target = $region48
        $region47: #{tpu_custom_call.1} parent=31 // pred_region
          %v658 = vld [vmem:[#allocation2] sm:$0xff]
          %v659 = vld [vmem:[#allocation2 + $0x8] sm:$0xff]
          %v660 = vld [vmem:[#allocation2 + $0x10] sm:$0xff]
          %v661 = vld [vmem:[#allocation2 + $0x18] sm:$0xff]
          %v662 = vld [vmem:[#allocation2 + $0x20] sm:$0xff]
          %v663 = vld [vmem:[#allocation2 + $0x28] sm:$0xff]
          %v664 = vld [vmem:[%s258] sm:$0x1]
          %v666 = vlaneseq
          %v667 = vshrl.u32 %v666, 7
          %v668 = vsub.s32 0, %v667
          %v669 = vrot.slane %v664, %v668
          %v671 = vadd.f32 %v658, %v669
          %v672 = vadd.f32 %v659, %v669
          %v673 = vadd.f32 %v660, %v669
          %v674 = vadd.f32 %v661, %v669
          %v675 = vadd.f32 %v662, %v669
          %v676 = vadd.f32 %v663, %v669
          %v677 = vmax.f32 %v671, 0.0
          %v678 = vmax.f32 %v672, 0.0
          %v679 = vmax.f32 %v673, 0.0
          %v680 = vmax.f32 %v674, 0.0
          %v681 = vmax.f32 %v675, 0.0
          %v682 = vmax.f32 %v676, 0.0
          %683 = vst [vmem:[%s252] sm:$0xff] %v677
          %684 = vst [vmem:[%s252 + $0x8] sm:$0xff] %v678
          %685 = vst [vmem:[%s252 + $0x10] sm:$0xff] %v679
          %686 = vst [vmem:[%s252 + $0x18] sm:$0xff] %v680
          %687 = vst [vmem:[%s252 + $0x20] sm:$0xff] %v681
          %688 = vst [vmem:[%s252 + $0x28] sm:$0xff] %v682
        $region48: #{tpu_custom_call.1} parent=31 // pred_fallthru
          _
        %s689 = sand.u32 %s132, 1
        %s690 = scalar_lea.sflag [#allocation5], %s689
        %s691 = sand.u32 %s132, 1
        %s692 = smul.addr %s691, 48
        %s693 = scalar_lea.vmem [#allocation8], %s692
        // Predicated region
        $region49: #{tpu_custom_call.1} parent=31 // pred_check
          %p694 = pneg %p142
        $region50: #{tpu_custom_call.1} parent=31 // pred_check_branch
          %696 = sbr.rel (%p694) target = $region52
        $region51: #{tpu_custom_call.1} parent=31 // pred_region
          %s697 = smul.u32 6, %s26
          %s699 = ssub.s32 768, 768
          %700 = vsyncadd %s690, %s699
          %s701 = smul.addr %s697, 2
          %s702 = sadd.s32 %s27, %s701
          %s703 = smul.addr %s702, 128
          %s704 = scalar_lea.hbm %s3, %s703
          %s705 = sshll.u32 %s693, 4
          %s706 = int_to_ptr.vmem [resolvable:$true] %s705
          %711 = dma.vmem_to_hbm [thread:$0]  %s706, 768, %s704, %s690, 128, 256, 8
        $region52: #{tpu_custom_call.1} parent=31 // pred_fallthru
          _
      $region32: #{tpu_custom_call.1} parent=5 // pred_fallthru
        _
      %p712 = scmp.le.s32.totalorder 2, %s16
      // Predicated region
      $region53: #{tpu_custom_call.1} parent=5 // pred_check
        %p713 = pneg %p712
      $region54: #{tpu_custom_call.1} parent=5 // pred_check_branch
        %715 = sbr.rel (%p713) target = $region56
      $region55: #{tpu_custom_call.1} parent=5 // pred_region
        %s716 = ssub.s32 %s16, 2
        // Predicated region
        $region57: #{tpu_custom_call.1} parent=55 // pred_check
          %p717 = pneg %p148
        $region58: #{tpu_custom_call.1} parent=55 // pred_check_branch
          %719 = sbr.rel (%p717) target = $region60
        $region59: #{tpu_custom_call.1} parent=55 // pred_region
          %s720 = sand.u32 %s133, 1
          %s721 = scalar_lea.sflag [#allocation5], %s720
          %s722 = sand.u32 %s133, 1
          %s723 = smul.addr %s722, 48
          %s724 = scalar_lea.vmem [#allocation8], %s723
          %725 = dma.done %s721, 768
        $region60: #{tpu_custom_call.1} parent=55 // pred_fallthru
          _
      $region56: #{tpu_custom_call.1} parent=5 // pred_fallthru
        _
    $region6: #{tpu_custom_call.1} parent=1 // loop_footer
      %s20 = sadd.s32 1, %s16
    $region7: #{tpu_custom_call.1} parent=1 // loop_footer_branch
      %15 = sbr.rel target = $region3
    $region8: #{tpu_custom_call.1} parent=1 // loop_exit
      _
    %726 = vsyncpa [#allocation4], 1
    %s727 = scalar_lea.sflag [#allocation4], 1
    %728 = vsyncpa %s727, 1
    %729 = vsyncpa [#allocation7], 1
    %s730 = scalar_lea.sflag [#allocation7], 1
    %731 = vsyncpa %s730, 1
    %732 = vsyncpa [#allocation5], 1
    %s733 = scalar_lea.sflag [#allocation5], 1
    %734 = vsyncpa %s733, 1

</llo_original>
